<compile_context>
chip_gen: v7x
topology: tpu7x:2x2x1
jax: 0.10.0
libtpu: 0.0.40
codegen_flags: <defaults>
</compile_context>

<pallas_src>
import jax
import jax.numpy as jnp
from jax.experimental import pallas as pl
from jax.experimental.pallas import tpu as pltpu

LANE = 128
SUBLANE = 8


def _nonuniform_round_kernel(levels_ref, mids_ref, x_ref, o_ref):
    """levels_ref: SMEM (L,) f32 sorted; mids_ref: SMEM (L-1,) f32 midpoints;
    x_ref/o_ref: VMEM (tm, 128) tiles (native dtype in, native dtype out)."""
    L = levels_ref.shape[0]
    # Compute the compare/select chain in f32 for bit-stable decisions,
    # regardless of the storage dtype of x.
    xf = x_ref[...].astype(jnp.float32)

    # Midpoint-threshold chain (L-1 compares + L-1 selects per element).
    out = jnp.where(xf > mids_ref[0], levels_ref[1], levels_ref[0])
    for j in range(2, L):  # L is small & static -> fully unrolled on the VPU
        out = jnp.where(xf > mids_ref[j - 1], levels_ref[j], out)

    o_ref[...] = out.astype(o_ref.dtype)


def nonuniform_round_ste(x, levels, *, block_rows=1024):
    """Forward of NonUniformRoundSTE. x: any-shape float array. levels: 1D (L>=2)."""
    levels = jnp.sort(jnp.asarray(levels, dtype=jnp.float32))
    L = levels.shape[0]
    assert L >= 2, "need at least two quantization levels"
    mids = 0.5 * (levels[:-1] + levels[1:])  # (L-1,) midpoints, f32

    orig_shape = x.shape
    orig_dtype = x.dtype

    # Lane-dense 2D slab (rows, 128) in the ORIGINAL dtype (no f32 up-cast pass).
    flat = x.reshape(-1)
    n = flat.shape[0]
    n_lane = pl.cdiv(n, LANE) * LANE
    padded = n_lane != n
    if padded:
        flat = jnp.pad(flat, (0, n_lane - n))  # pad only to a lane multiple
    x2 = flat.reshape(-1, LANE)
    rows = x2.shape[0]

    # Block sizing: big blocks for throughput; a single full-extent block for
    # small inputs.  block_rows is a multiple of 8; a ragged last block is
    # masked by Pallas automatically (no tile-multiple padding needed).
    if rows <= block_rows:
        tm = rows                      # full-extent block (always legal)
    else:
        tm = block_rows                # (1024,128) f32 = 512 KiB/buffer
    grid = pl.cdiv(rows, tm)

    out2 = pl.pallas_call(
        _nonuniform_round_kernel,
        out_shape=jax.ShapeDtypeStruct((rows, LANE), orig_dtype),
        grid_spec=pl.GridSpec(
            grid=(grid,),
            in_specs=[
                pl.BlockSpec(memory_space=pltpu.SMEM),        # levels  (L,)
                pl.BlockSpec(memory_space=pltpu.SMEM),        # mids    (L-1,)
                pl.BlockSpec((tm, LANE), lambda i: (i, 0)),   # x tile
            ],
            out_specs=pl.BlockSpec((tm, LANE), lambda i: (i, 0)),
        ),
        compiler_params=pltpu.CompilerParams(
            dimension_semantics=("parallel",)),               # megacore-shardable
    )(levels, mids, x2)

    if padded:
        return out2.reshape(-1)[:n].reshape(orig_shape)
    return out2.reshape(orig_shape)


def _reference(x, levels):
    """Pure-JAX reference mirroring the PyTorch forward exactly."""
    levels = jnp.sort(jnp.asarray(levels, jnp.float32))
    L = levels.shape[0]
    xc = jnp.clip(x.astype(jnp.float32), levels[0], levels[-1])
    idx = jnp.searchsorted(levels, xc, side="left")
    idx = jnp.clip(idx, 1, L - 1)
    left = levels[idx - 1]
    right = levels[idx]
    rounded = jnp.where(jnp.abs(xc - right) < jnp.abs(xc - left), right, left)
    return rounded.astype(x.dtype)


if __name__ == "__main__":
    key = jax.random.PRNGKey(0)

    # Deterministic non-uniform quantization levels (RaZeR-style 4-bit grid).
    levels = jnp.array(
        [-2.0, -1.5, -1.0, -0.6, -0.3, -0.1, 0.0, 0.05,
          0.1,  0.3,  0.6,  1.0,  1.3,  1.6,  2.0, 2.5],
        dtype=jnp.float32,
    )

    # Small NCHW input consistent with the module (activations/weights).
    x = jax.random.normal(key, (2, 4, 16, 16), dtype=jnp.float32) * 2.0
    out = jax.block_until_ready(nonuniform_round_ste(x, levels))
    ref = _reference(x, levels)
    assert out.shape == x.shape and out.dtype == x.dtype
    assert jnp.allclose(out, ref), "mismatch vs reference (NCHW case)"

    # Ragged-size input to exercise the lane-padding path.
    x2 = jax.random.normal(jax.random.PRNGKey(1), (3, 5, 7), dtype=jnp.float32) * 1.5
    out2 = jax.block_until_ready(nonuniform_round_ste(x2, levels))
    ref2 = _reference(x2, levels)
    assert out2.shape == x2.shape and out2.dtype == x2.dtype
    assert jnp.allclose(out2, ref2), "mismatch vs reference (ragged case)"

    # TODO(synk): NaN inputs map to levels[0] here (all compares false), whereas a
    # searchsorted-based reference maps NaN to the top level; irrelevant for finite inputs.
    print("KERNEL_OK")
</pallas_src>

<mosaic_0001>
module attributes {stable_mosaic.version = 11 : i64} {
  func.func @_nonuniform_round_kernel(%arg0: i32, %arg1: memref<16xf32, #tpu.memory_space<smem>>, %arg2: memref<15xf32, #tpu.memory_space<smem>>, %arg3: memref<16x128xf32, #tpu.memory_space<vmem>>, %arg4: memref<16x128xf32, #tpu.memory_space<vmem>>) attributes {dimension_semantics = [#tpu.dimension_semantics<parallel>], iteration_bounds = array<i64: 1>, scalar_prefetch = 0 : i64, scratch_operands = 0 : i64, tpu.core_type = #tpu.core_type<tc>, window_params = [{transform_indices = @transform_0, window_bounds = array<i64: 16>}, {transform_indices = @transform_1, window_bounds = array<i64: 15>}, {transform_indices = @transform_2, window_bounds = array<i64: 16, 128>}, {transform_indices = @transform_3, window_bounds = array<i64: 16, 128>}]} {
    %c0 = arith.constant 0 : index
    %c0_0 = arith.constant 0 : index
    %0 = vector.load %arg3[%c0, %c0_0] : memref<16x128xf32, #tpu.memory_space<vmem>>, vector<16x128xf32>
    %c0_1 = arith.constant 0 : index
    %1 = memref.load %arg2[%c0_1] : memref<15xf32, #tpu.memory_space<smem>>
    %2 = vector.broadcast %1 : f32 to vector<16x128xf32>
    %3 = arith.cmpf ogt, %0, %2 : vector<16x128xf32>
    %c1 = arith.constant 1 : index
    %4 = memref.load %arg1[%c1] : memref<16xf32, #tpu.memory_space<smem>>
    %c0_2 = arith.constant 0 : index
    %5 = memref.load %arg1[%c0_2] : memref<16xf32, #tpu.memory_space<smem>>
    %6 = vector.broadcast %4 : f32 to vector<16x128xf32>
    %7 = vector.broadcast %5 : f32 to vector<16x128xf32>
    %8 = arith.select %3, %6, %7 : vector<16x128xi1>, vector<16x128xf32>
    %c1_3 = arith.constant 1 : index
    %9 = memref.load %arg2[%c1_3] : memref<15xf32, #tpu.memory_space<smem>>
    %10 = vector.broadcast %9 : f32 to vector<16x128xf32>
    %11 = arith.cmpf ogt, %0, %10 : vector<16x128xf32>
    %c2 = arith.constant 2 : index
    %12 = memref.load %arg1[%c2] : memref<16xf32, #tpu.memory_space<smem>>
    %13 = vector.broadcast %12 : f32 to vector<16x128xf32>
    %14 = arith.select %11, %13, %8 : vector<16x128xi1>, vector<16x128xf32>
    %c2_4 = arith.constant 2 : index
    %15 = memref.load %arg2[%c2_4] : memref<15xf32, #tpu.memory_space<smem>>
    %16 = vector.broadcast %15 : f32 to vector<16x128xf32>
    %17 = arith.cmpf ogt, %0, %16 : vector<16x128xf32>
    %c3 = arith.constant 3 : index
    %18 = memref.load %arg1[%c3] : memref<16xf32, #tpu.memory_space<smem>>
    %19 = vector.broadcast %18 : f32 to vector<16x128xf32>
    %20 = arith.select %17, %19, %14 : vector<16x128xi1>, vector<16x128xf32>
    %c3_5 = arith.constant 3 : index
    %21 = memref.load %arg2[%c3_5] : memref<15xf32, #tpu.memory_space<smem>>
    %22 = vector.broadcast %21 : f32 to vector<16x128xf32>
    %23 = arith.cmpf ogt, %0, %22 : vector<16x128xf32>
    %c4 = arith.constant 4 : index
    %24 = memref.load %arg1[%c4] : memref<16xf32, #tpu.memory_space<smem>>
    %25 = vector.broadcast %24 : f32 to vector<16x128xf32>
    %26 = arith.select %23, %25, %20 : vector<16x128xi1>, vector<16x128xf32>
    %c4_6 = arith.constant 4 : index
    %27 = memref.load %arg2[%c4_6] : memref<15xf32, #tpu.memory_space<smem>>
    %28 = vector.broadcast %27 : f32 to vector<16x128xf32>
    %29 = arith.cmpf ogt, %0, %28 : vector<16x128xf32>
    %c5 = arith.constant 5 : index
    %30 = memref.load %arg1[%c5] : memref<16xf32, #tpu.memory_space<smem>>
    %31 = vector.broadcast %30 : f32 to vector<16x128xf32>
    %32 = arith.select %29, %31, %26 : vector<16x128xi1>, vector<16x128xf32>
    %c5_7 = arith.constant 5 : index
    %33 = memref.load %arg2[%c5_7] : memref<15xf32, #tpu.memory_space<smem>>
    %34 = vector.broadcast %33 : f32 to vector<16x128xf32>
    %35 = arith.cmpf ogt, %0, %34 : vector<16x128xf32>
    %c6 = arith.constant 6 : index
    %36 = memref.load %arg1[%c6] : memref<16xf32, #tpu.memory_space<smem>>
    %37 = vector.broadcast %36 : f32 to vector<16x128xf32>
    %38 = arith.select %35, %37, %32 : vector<16x128xi1>, vector<16x128xf32>
    %c6_8 = arith.constant 6 : index
    %39 = memref.load %arg2[%c6_8] : memref<15xf32, #tpu.memory_space<smem>>
    %40 = vector.broadcast %39 : f32 to vector<16x128xf32>
    %41 = arith.cmpf ogt, %0, %40 : vector<16x128xf32>
    %c7 = arith.constant 7 : index
    %42 = memref.load %arg1[%c7] : memref<16xf32, #tpu.memory_space<smem>>
    %43 = vector.broadcast %42 : f32 to vector<16x128xf32>
    %44 = arith.select %41, %43, %38 : vector<16x128xi1>, vector<16x128xf32>
    %c7_9 = arith.constant 7 : index
    %45 = memref.load %arg2[%c7_9] : memref<15xf32, #tpu.memory_space<smem>>
    %46 = vector.broadcast %45 : f32 to vector<16x128xf32>
    %47 = arith.cmpf ogt, %0, %46 : vector<16x128xf32>
    %c8 = arith.constant 8 : index
    %48 = memref.load %arg1[%c8] : memref<16xf32, #tpu.memory_space<smem>>
    %49 = vector.broadcast %48 : f32 to vector<16x128xf32>
    %50 = arith.select %47, %49, %44 : vector<16x128xi1>, vector<16x128xf32>
    %c8_10 = arith.constant 8 : index
    %51 = memref.load %arg2[%c8_10] : memref<15xf32, #tpu.memory_space<smem>>
    %52 = vector.broadcast %51 : f32 to vector<16x128xf32>
    %53 = arith.cmpf ogt, %0, %52 : vector<16x128xf32>
    %c9 = arith.constant 9 : index
    %54 = memref.load %arg1[%c9] : memref<16xf32, #tpu.memory_space<smem>>
    %55 = vector.broadcast %54 : f32 to vector<16x128xf32>
    %56 = arith.select %53, %55, %50 : vector<16x128xi1>, vector<16x128xf32>
    %c9_11 = arith.constant 9 : index
    %57 = memref.load %arg2[%c9_11] : memref<15xf32, #tpu.memory_space<smem>>
    %58 = vector.broadcast %57 : f32 to vector<16x128xf32>
    %59 = arith.cmpf ogt, %0, %58 : vector<16x128xf32>
    %c10 = arith.constant 10 : index
    %60 = memref.load %arg1[%c10] : memref<16xf32, #tpu.memory_space<smem>>
    %61 = vector.broadcast %60 : f32 to vector<16x128xf32>
    %62 = arith.select %59, %61, %56 : vector<16x128xi1>, vector<16x128xf32>
    %c10_12 = arith.constant 10 : index
    %63 = memref.load %arg2[%c10_12] : memref<15xf32, #tpu.memory_space<smem>>
    %64 = vector.broadcast %63 : f32 to vector<16x128xf32>
    %65 = arith.cmpf ogt, %0, %64 : vector<16x128xf32>
    %c11 = arith.constant 11 : index
    %66 = memref.load %arg1[%c11] : memref<16xf32, #tpu.memory_space<smem>>
    %67 = vector.broadcast %66 : f32 to vector<16x128xf32>
    %68 = arith.select %65, %67, %62 : vector<16x128xi1>, vector<16x128xf32>
    %c11_13 = arith.constant 11 : index
    %69 = memref.load %arg2[%c11_13] : memref<15xf32, #tpu.memory_space<smem>>
    %70 = vector.broadcast %69 : f32 to vector<16x128xf32>
    %71 = arith.cmpf ogt, %0, %70 : vector<16x128xf32>
    %c12 = arith.constant 12 : index
    %72 = memref.load %arg1[%c12] : memref<16xf32, #tpu.memory_space<smem>>
    %73 = vector.broadcast %72 : f32 to vector<16x128xf32>
    %74 = arith.select %71, %73, %68 : vector<16x128xi1>, vector<16x128xf32>
    %c12_14 = arith.constant 12 : index
    %75 = memref.load %arg2[%c12_14] : memref<15xf32, #tpu.memory_space<smem>>
    %76 = vector.broadcast %75 : f32 to vector<16x128xf32>
    %77 = arith.cmpf ogt, %0, %76 : vector<16x128xf32>
    %c13 = arith.constant 13 : index
    %78 = memref.load %arg1[%c13] : memref<16xf32, #tpu.memory_space<smem>>
    %79 = vector.broadcast %78 : f32 to vector<16x128xf32>
    %80 = arith.select %77, %79, %74 : vector<16x128xi1>, vector<16x128xf32>
    %c13_15 = arith.constant 13 : index
    %81 = memref.load %arg2[%c13_15] : memref<15xf32, #tpu.memory_space<smem>>
    %82 = vector.broadcast %81 : f32 to vector<16x128xf32>
    %83 = arith.cmpf ogt, %0, %82 : vector<16x128xf32>
    %c14 = arith.constant 14 : index
    %84 = memref.load %arg1[%c14] : memref<16xf32, #tpu.memory_space<smem>>
    %85 = vector.broadcast %84 : f32 to vector<16x128xf32>
    %86 = arith.select %83, %85, %80 : vector<16x128xi1>, vector<16x128xf32>
    %c14_16 = arith.constant 14 : index
    %87 = memref.load %arg2[%c14_16] : memref<15xf32, #tpu.memory_space<smem>>
    %88 = vector.broadcast %87 : f32 to vector<16x128xf32>
    %89 = arith.cmpf ogt, %0, %88 : vector<16x128xf32>
    %c15 = arith.constant 15 : index
    %90 = memref.load %arg1[%c15] : memref<16xf32, #tpu.memory_space<smem>>
    %91 = vector.broadcast %90 : f32 to vector<16x128xf32>
    %92 = arith.select %89, %91, %86 : vector<16x128xi1>, vector<16x128xf32>
    %c0_17 = arith.constant 0 : index
    %c0_18 = arith.constant 0 : index
    %93 = vector.load %arg4[%c0_17, %c0_18] : memref<16x128xf32, #tpu.memory_space<vmem>>, vector<16x128xf32>
    tpu.vector_store %arg4[%c0_17, %c0_18], %92 {strides = array<i32>} : memref<16x128xf32, #tpu.memory_space<vmem>>, vector<16x128xf32>,
    return
  }
  func.func @transform_0(%arg0: i32) -> i32 {
    %c0_i32 = arith.constant 0 : i32
    %c0_i32_0 = arith.constant 0 : i32
    return %c0_i32 : i32
  }
  func.func @transform_1(%arg0: i32) -> i32 {
    %c0_i32 = arith.constant 0 : i32
    %c0_i32_0 = arith.constant 0 : i32
    return %c0_i32 : i32
  }
  func.func @transform_2(%arg0: i32) -> (i32, i32) {
    %c0_i32 = arith.constant 0 : i32
    %c0_i32_0 = arith.constant 0 : i32
    return %arg0, %c0_i32 : i32, i32
  }
  func.func @transform_3(%arg0: i32) -> (i32, i32) {
    %c0_i32 = arith.constant 0 : i32
    %c0_i32_0 = arith.constant 0 : i32
    return %arg0, %c0_i32 : i32, i32
  }
}

</mosaic_0001>

<llo_original>
// kernel: tpu_custom_call.1
$region0: #{tpu_custom_call.1}
  #allocation0 [shape = 'u32[]', space=smem, size = 0x4, offset = 0x4, fixed_abs, tag = 'smem constant byte address 0x4 - core index']
  #allocation1 [shape = 'u32[144,128]{1,0:T(1,128)}', space=vmem, size = 0x12000, scoped, tag = 'internal scratch']
  %s0 = inlined_call_operand.hbm [shape: f32[16], index: 0, kind: input, shape index: {}]
  %s1 = inlined_call_operand.vmem [shape: f32[15], index: 1, kind: input, shape index: {}]
  %s2 = inlined_call_operand.hbm [shape: f32[16,128], index: 2, kind: input, shape index: {}]
  %s3 = inlined_call_operand.hbm [shape: f32[16,128], index: 3, kind: output, shape index: {}]
  %s4 = sld [smem:[#allocation0]]
  $region34: #{tpu_custom_call.1} parent=0
    _
  %s6 = ssub.s32 1, %s4
  %s7 = scalar_select 0, %s6, %s4
  $region1: #{tpu_custom_call.1} parent=0
    #allocation2 [shape = 'u8[512]{0}', space=smem, size = 0x200, scoped, tag = 'input window, operand 0, single buffered']
    #allocation3 [shape = 's32[1]{0}', space=sflag, size = 0x4, scoped, tag = 'scoped memory for tpu_custom_call.1']
    #allocation4 [shape = 's32[1]{0}', space=sflag, size = 0x4, scoped, tag = 'scoped memory for tpu_custom_call.1']
    #allocation5 [shape = 's32[1]{0}', space=sflag, size = 0x4, scoped, tag = 'scoped memory for tpu_custom_call.1']
    #allocation6 [shape = 's32[1]{0}', space=sflag, size = 0x4, scoped, tag = 'scoped memory for tpu_custom_call.1']
    #allocation7 [shape = 'u8[512]{0}', space=smem, size = 0x200, scoped, tag = 'input window, operand 1, single buffered']
    #allocation8 [shape = 'u8[8192]{0}', space=vmem, size = 0x2000, scoped, tag = 'input window, operand 2, single buffered']
    #allocation9 [shape = 'u8[8192]{0}', space=vmem, size = 0x2000, scoped, tag = 'output window, operand 0, single buffered']
    %8 = vsyncpa [#allocation5], 0
    %9 = vsyncpa [#allocation6], 0
    %10 = vsyncpa [#allocation3], 0
    %11 = vsyncpa [#allocation4], 0
    // Predicated region
    $region2: #{tpu_custom_call.1} parent=1 // pred_check
      _
    $region3: #{tpu_custom_call.1} parent=1 // pred_check_branch
      %13 = sbr.rel (0) target = $region5
    $region4: #{tpu_custom_call.1} parent=1 // pred_region
      %s15 = ssub.s32 16, 16
      %16 = vsyncadd [#allocation5], %s15
      %19 = dma.hbm_to_smem %s0, 16, [#allocation2], [#allocation5]
    $region5: #{tpu_custom_call.1} parent=1 // pred_fallthru
      _
    // Predicated region
    $region6: #{tpu_custom_call.1} parent=1 // pred_check
      _
    $region7: #{tpu_custom_call.1} parent=1 // pred_check_branch
      %21 = sbr.rel (0) target = $region9
    $region8: #{tpu_custom_call.1} parent=1 // pred_region
      %s23 = ssub.s32 16, 16
      %24 = vsyncadd [#allocation6], %s23
      %s26 = sshll.u32 %s1, 4
      %s27 = int_to_ptr.vmem [resolvable:$true] %s26
      %29 = dma.vmem_to_smem %s27, 16, [#allocation7], [#allocation6]
    $region9: #{tpu_custom_call.1} parent=1 // pred_fallthru
      _
    // Predicated region
    $region10: #{tpu_custom_call.1} parent=1 // pred_check
      _
    $region11: #{tpu_custom_call.1} parent=1 // pred_check_branch
      %31 = sbr.rel (0) target = $region13
    $region12: #{tpu_custom_call.1} parent=1 // pred_region
      %s33 = ssub.s32 256, 256
      %34 = vsyncadd [#allocation3], %s33
      %s35 = sshll.u32 [#allocation8], 4
      %s36 = int_to_ptr.vmem [resolvable:$true] %s35
      %41 = dma.hbm_to_vmem [thread:$0]  %s2, 256, %s36, [#allocation3], 128, 128, 8
    $region13: #{tpu_custom_call.1} parent=1 // pred_fallthru
      _
    // Predicated region
    $region14: #{tpu_custom_call.1} parent=1 // pred_check
      _
    $region15: #{tpu_custom_call.1} parent=1 // pred_check_branch
      %43 = sbr.rel (0) target = $region17
    $region16: #{tpu_custom_call.1} parent=1 // pred_region
      %44 = dma.done [#allocation5], 16
    $region17: #{tpu_custom_call.1} parent=1 // pred_fallthru
      _
    // Predicated region
    $region18: #{tpu_custom_call.1} parent=1 // pred_check
      _
    $region19: #{tpu_custom_call.1} parent=1 // pred_check_branch
      %46 = sbr.rel (0) target = $region21
    $region20: #{tpu_custom_call.1} parent=1 // pred_region
      %47 = dma.done [#allocation6], 16
    $region21: #{tpu_custom_call.1} parent=1 // pred_fallthru
      _
    // Predicated region
    $region22: #{tpu_custom_call.1} parent=1 // pred_check
      _
    $region23: #{tpu_custom_call.1} parent=1 // pred_check_branch
      %49 = sbr.rel (0) target = $region25
    $region24: #{tpu_custom_call.1} parent=1 // pred_region
      %50 = dma.done [#allocation3], 256
    $region25: #{tpu_custom_call.1} parent=1 // pred_fallthru
      _
    %51 = sfence
    %v52 = vld [vmem:[#allocation8] sm:$0xff]
    %v53 = vld [vmem:[#allocation8 + $0x8] sm:$0xff]
    %s54 = sld [smem:[#allocation7]]
    %v55 = vstv %s54
    %vm56 = vcmp.gt.f32.partialorder %v52, %v55
    %vm57 = vcmp.gt.f32.partialorder %v53, %v55
    %s58 = sld [smem:[#allocation2 + $0x1]]
    %s59 = sld [smem:[#allocation2]]
    %v60 = vstv %s58
    %v61 = vstv %s59
    %v62 = vsel %vm56, %v60, %v61
    %v63 = vsel %vm57, %v60, %v61
    %s64 = sld [smem:[#allocation7 + $0x1]]
    %v65 = vstv %s64
    %vm66 = vcmp.gt.f32.partialorder %v52, %v65
    %vm67 = vcmp.gt.f32.partialorder %v53, %v65
    %s68 = sld [smem:[#allocation2 + $0x2]]
    %v69 = vstv %s68
    %v70 = vsel %vm66, %v69, %v62
    %v71 = vsel %vm67, %v69, %v63
    %s72 = sld [smem:[#allocation7 + $0x2]]
    %v73 = vstv %s72
    %vm74 = vcmp.gt.f32.partialorder %v52, %v73
    %vm75 = vcmp.gt.f32.partialorder %v53, %v73
    %s76 = sld [smem:[#allocation2 + $0x3]]
    %v77 = vstv %s76
    %v78 = vsel %vm74, %v77, %v70
    %v79 = vsel %vm75, %v77, %v71
    %s80 = sld [smem:[#allocation7 + $0x3]]
    %v81 = vstv %s80
    %vm82 = vcmp.gt.f32.partialorder %v52, %v81
    %vm83 = vcmp.gt.f32.partialorder %v53, %v81
    %s84 = sld [smem:[#allocation2 + $0x4]]
    %v85 = vstv %s84
    %v86 = vsel %vm82, %v85, %v78
    %v87 = vsel %vm83, %v85, %v79
    %s88 = sld [smem:[#allocation7 + $0x4]]
    %v89 = vstv %s88
    %vm90 = vcmp.gt.f32.partialorder %v52, %v89
    %vm91 = vcmp.gt.f32.partialorder %v53, %v89
    %s92 = sld [smem:[#allocation2 + $0x5]]
    %v93 = vstv %s92
    %v94 = vsel %vm90, %v93, %v86
    %v95 = vsel %vm91, %v93, %v87
    %s96 = sld [smem:[#allocation7 + $0x5]]
    %v97 = vstv %s96
    %vm98 = vcmp.gt.f32.partialorder %v52, %v97
    %vm99 = vcmp.gt.f32.partialorder %v53, %v97
    %s100 = sld [smem:[#allocation2 + $0x6]]
    %v101 = vstv %s100
    %v102 = vsel %vm98, %v101, %v94
    %v103 = vsel %vm99, %v101, %v95
    %s104 = sld [smem:[#allocation7 + $0x6]]
    %v105 = vstv %s104
    %vm106 = vcmp.gt.f32.partialorder %v52, %v105
    %vm107 = vcmp.gt.f32.partialorder %v53, %v105
    %s108 = sld [smem:[#allocation2 + $0x7]]
    %v109 = vstv %s108
    %v110 = vsel %vm106, %v109, %v102
    %v111 = vsel %vm107, %v109, %v103
    %s112 = sld [smem:[#allocation7 + $0x7]]
    %v113 = vstv %s112
    %vm114 = vcmp.gt.f32.partialorder %v52, %v113
    %vm115 = vcmp.gt.f32.partialorder %v53, %v113
    %s116 = sld [smem:[#allocation2 + $0x8]]
    %v117 = vstv %s116
    %v118 = vsel %vm114, %v117, %v110
    %v119 = vsel %vm115, %v117, %v111
    %s120 = sld [smem:[#allocation7 + $0x8]]
    %v121 = vstv %s120
    %vm122 = vcmp.gt.f32.partialorder %v52, %v121
    %vm123 = vcmp.gt.f32.partialorder %v53, %v121
    %s124 = sld [smem:[#allocation2 + $0x9]]
    %v125 = vstv %s124
    %v126 = vsel %vm122, %v125, %v118
    %v127 = vsel %vm123, %v125, %v119
    %s128 = sld [smem:[#allocation7 + $0x9]]
    %v129 = vstv %s128
    %vm130 = vcmp.gt.f32.partialorder %v52, %v129
    %vm131 = vcmp.gt.f32.partialorder %v53, %v129
    %s132 = sld [smem:[#allocation2 + $0xa]]
    %v133 = vstv %s132
    %v134 = vsel %vm130, %v133, %v126
    %v135 = vsel %vm131, %v133, %v127
    %s136 = sld [smem:[#allocation7 + $0xa]]
    %v137 = vstv %s136
    %vm138 = vcmp.gt.f32.partialorder %v52, %v137
    %vm139 = vcmp.gt.f32.partialorder %v53, %v137
    %s140 = sld [smem:[#allocation2 + $0xb]]
    %v141 = vstv %s140
    %v142 = vsel %vm138, %v141, %v134
    %v143 = vsel %vm139, %v141, %v135
    %s144 = sld [smem:[#allocation7 + $0xb]]
    %v145 = vstv %s144
    %vm146 = vcmp.gt.f32.partialorder %v52, %v145
    %vm147 = vcmp.gt.f32.partialorder %v53, %v145
    %s148 = sld [smem:[#allocation2 + $0xc]]
    %v149 = vstv %s148
    %v150 = vsel %vm146, %v149, %v142
    %v151 = vsel %vm147, %v149, %v143
    %s152 = sld [smem:[#allocation7 + $0xc]]
    %v153 = vstv %s152
    %vm154 = vcmp.gt.f32.partialorder %v52, %v153
    %vm155 = vcmp.gt.f32.partialorder %v53, %v153
    %s156 = sld [smem:[#allocation2 + $0xd]]
    %v157 = vstv %s156
    %v158 = vsel %vm154, %v157, %v150
    %v159 = vsel %vm155, %v157, %v151
    %s160 = sld [smem:[#allocation7 + $0xd]]
    %v161 = vstv %s160
    %vm162 = vcmp.gt.f32.partialorder %v52, %v161
    %vm163 = vcmp.gt.f32.partialorder %v53, %v161
    %s164 = sld [smem:[#allocation2 + $0xe]]
    %v165 = vstv %s164
    %v166 = vsel %vm162, %v165, %v158
    %v167 = vsel %vm163, %v165, %v159
    %s168 = sld [smem:[#allocation7 + $0xe]]
    %v169 = vstv %s168
    %vm170 = vcmp.gt.f32.partialorder %v52, %v169
    %vm171 = vcmp.gt.f32.partialorder %v53, %v169
    %s172 = sld [smem:[#allocation2 + $0xf]]
    %v173 = vstv %s172
    %v174 = vsel %vm170, %v173, %v166
    %v175 = vsel %vm171, %v173, %v167
    %176 = vst [vmem:[#allocation9] sm:$0xff] %v174
    %177 = vst [vmem:[#allocation9 + $0x8] sm:$0xff] %v175
    // Predicated region
    $region26: #{tpu_custom_call.1} parent=1 // pred_check
      _
    $region27: #{tpu_custom_call.1} parent=1 // pred_check_branch
      %179 = sbr.rel (0) target = $region29
    $region28: #{tpu_custom_call.1} parent=1 // pred_region
      %s181 = ssub.s32 256, 256
      %182 = vsyncadd [#allocation4], %s181
      %s183 = sshll.u32 [#allocation9], 4
      %s184 = int_to_ptr.vmem [resolvable:$true] %s183
      %189 = dma.vmem_to_hbm [thread:$0]  %s184, 256, %s3, [#allocation4], 128, 128, 8
    $region29: #{tpu_custom_call.1} parent=1 // pred_fallthru
      _
    // Predicated region
    $region30: #{tpu_custom_call.1} parent=1 // pred_check
      _
    $region31: #{tpu_custom_call.1} parent=1 // pred_check_branch
      %191 = sbr.rel (0) target = $region33
    $region32: #{tpu_custom_call.1} parent=1 // pred_region
      %192 = dma.done [#allocation4], 256
    $region33: #{tpu_custom_call.1} parent=1 // pred_fallthru
      _
    %193 = vsyncpa [#allocation3], 1
    %194 = vsyncpa [#allocation4], 1
    %195 = vsyncpa [#allocation5], 1
    %196 = vsyncpa [#allocation6], 1

</llo_original>
